<compile_context>
chip_gen: v6e
topology: v6e:2x2x1
jax: 0.10.0
libtpu: 0.0.40
codegen_flags: <defaults>
</compile_context>

<pallas_src>
import jax
import jax.numpy as jnp
from jax.experimental import pallas as pl
from jax.experimental.pallas import tpu as pltpu


def _round_up(x: int, m: int) -> int:
    return (x + m - 1) // m * m


def _inter_message_kernel(idx_ref, x_ref, w_ref, b_ref, o_ref, acc_ref):
    tile_d = acc_ref.shape[0]
    tile_n = idx_ref.shape[1]
    k = pl.program_id(1)

    @pl.when(k == 0)
    def _():
        acc_ref[...] = jnp.zeros_like(acc_ref)

    # One-hot scatter mask for this (bucket-tile, node-tile) pair, built in bf16 so the
    # scatter-sum runs on the bf16 MXU path with f32 accumulation. Padded nodes carry a
    # -1 index and never match any bucket, so tile tails are masked for free.
    d_base = pl.program_id(0) * tile_d
    d_iota = jax.lax.broadcasted_iota(jnp.int32, (tile_d, tile_n), 0) + d_base
    mask = (d_iota == idx_ref[...]).astype(jnp.bfloat16)            # (tile_d, tile_n)

    # Column 0 of x is an all-ones column: one MXU matmul accumulates both per-bucket
    # feature sums (cols 1..C_in) and per-bucket counts (col 0).
    acc_ref[...] += jnp.dot(mask, x_ref[...], preferred_element_type=jnp.float32)

    @pl.when(k == pl.num_programs(1) - 1)
    def _():
        acc = acc_ref[...]                                           # (tile_d, c_pad) f32
        counts = acc[:, 0:1]                                         # MXU-computed counts
        inv = pl.reciprocal(jnp.maximum(counts, 1.0), approx=True)   # EUP; empty buckets -> 0
        mean = (acc * inv).astype(jnp.bfloat16)
        # Linear + ReLU. Weight row 0 (count column) and all padded rows are zero, so
        # only the real in_channels contribute.
        h = jnp.dot(mean, w_ref[...], preferred_element_type=jnp.float32) + b_ref[...]
        o_ref[...] = jnp.maximum(h, 0.0)


def inter_message(from_tensor, to_index, dim_size, weight, bias):
    """Pallas implementation of InterMessage.forward (transform_scatter=False, reduction='mean').

    from_tensor: (num_nodes, in_channels) float32
    to_index:    (num_nodes,) int32 in [0, dim_size)
    weight:      (in_channels, out_channels) float32
    bias:        (out_channels,) float32
    returns:     (dim_size, out_channels) float32
    """
    num_nodes, in_channels = from_tensor.shape
    out_channels = weight.shape[1]

    # Lane-dense padding; reserve one extra leading input column (all ones) so the
    # scatter matmul also produces per-bucket counts.
    c_pad = _round_up(in_channels + 1, 128)
    co_pad = _round_up(out_channels, 128)

    # Node tile: as large as possible while the double-buffered bf16 input tile stays
    # small (<= ~4 MiB), amortizing per-grid-step overhead; adaptive for tiny inputs.
    tile_n = min(1024, _round_up(num_nodes, 128))
    while tile_n > 128 and 2 * tile_n * c_pad * 2 > 4 * 1024 * 1024:
        tile_n //= 2
    tile_d = min(256, _round_up(dim_size, 8))
    n_pad = _round_up(num_nodes, tile_n)
    d_pad = _round_up(dim_size, tile_d)

    # Node features: bf16, ones column at lane 0, real channels at lanes 1..in_channels.
    x = jnp.zeros((n_pad, c_pad), jnp.bfloat16)
    x = x.at[:num_nodes, 0].set(1.0)
    x = x.at[:num_nodes, 1:1 + in_channels].set(from_tensor.astype(jnp.bfloat16))

    # Indices as a (1, n_pad) int32 row; padded tail gets -1 sentinel (never matches).
    idx = jnp.full((1, n_pad), -1, jnp.int32)
    idx = idx.at[0, :num_nodes].set(to_index.astype(jnp.int32))

    # Weight padded to (c_pad, co_pad) bf16; row 0 (count column) and padded rows are zero.
    w = jnp.zeros((c_pad, co_pad), jnp.bfloat16)
    w = w.at[1:1 + in_channels, :out_channels].set(weight.astype(jnp.bfloat16))
    b = jnp.zeros((1, co_pad), jnp.float32).at[0, :out_channels].set(bias.astype(jnp.float32))

    grid = (d_pad // tile_d, n_pad // tile_n)

    flops = 2 * d_pad * n_pad * c_pad + 2 * d_pad * c_pad * co_pad
    bytes_accessed = (
        (d_pad // tile_d) * (n_pad * c_pad * 2 + n_pad * 4)   # x + idx re-streamed per bucket tile
        + c_pad * co_pad * 2 + co_pad * 4                     # weight + bias (resident)
        + d_pad * co_pad * 4                                  # output
    )

    out = pl.pallas_call(
        _inter_message_kernel,
        out_shape=jax.ShapeDtypeStruct((d_pad, co_pad), jnp.float32),
        grid_spec=pltpu.PrefetchScalarGridSpec(
            num_scalar_prefetch=0,
            grid=grid,
            in_specs=[
                pl.BlockSpec((1, tile_n), lambda d, k: (0, k)),        # indices (per node tile)
                pl.BlockSpec((tile_n, c_pad), lambda d, k: (k, 0)),    # node features
                pl.BlockSpec((c_pad, co_pad), lambda d, k: (0, 0)),    # weight (resident)
                pl.BlockSpec((1, co_pad), lambda d, k: (0, 0)),        # bias (resident)
            ],
            out_specs=pl.BlockSpec((tile_d, co_pad), lambda d, k: (d, 0)),
            scratch_shapes=[pltpu.VMEM((tile_d, c_pad), jnp.float32)],
        ),
        compiler_params=pltpu.CompilerParams(
            dimension_semantics=("parallel", "arbitrary"),
            vmem_limit_bytes=64 * 1024 * 1024,
        ),
        cost_estimate=pl.CostEstimate(
            flops=int(flops), transcendentals=0, bytes_accessed=int(bytes_accessed)
        ),
    )(idx, x, w, b)

    # TODO(synk): with pre-sorted indices + scalar-prefetched bucket offsets the empty
    # (bucket-tile, node-tile) pairs could be skipped via the index_map; not wired in.
    return out[:dim_size, :out_channels]


def _reference(from_tensor, to_index, dim_size, weight, bias):
    """Pure-JAX f32 reference (scatter-mean then Linear+ReLU)."""
    sums = jnp.zeros((dim_size, from_tensor.shape[1]), jnp.float32).at[to_index].add(from_tensor)
    counts = jnp.zeros((dim_size,), jnp.float32).at[to_index].add(1.0)
    mean = sums / jnp.maximum(counts, 1.0)[:, None]
    return jnp.maximum(mean @ weight + bias[None, :], 0.0)


if __name__ == "__main__":
    key = jax.random.PRNGKey(0)
    k_x, k_idx, k_w, k_b = jax.random.split(key, 4)

    num_nodes = 16
    in_channels = 32
    out_channels = 32
    dim_size = 8

    from_tensor = jax.random.normal(k_x, (num_nodes, in_channels), jnp.float32)
    to_index = jax.random.randint(k_idx, (num_nodes,), 0, dim_size, jnp.int32)
    # Deterministic Linear params (analogue of nn.Linear init, no checkpoint load).
    weight = jax.random.normal(k_w, (in_channels, out_channels), jnp.float32) * (1.0 / in_channels ** 0.5)
    bias = jax.random.normal(k_b, (out_channels,), jnp.float32) * 0.01

    out = inter_message(from_tensor, to_index, dim_size, weight, bias)
    out = jax.block_until_ready(out)

    ref = _reference(from_tensor, to_index, dim_size, weight, bias)
    assert out.shape == (dim_size, out_channels)
    # bf16 MXU path + approx reciprocal: allow ~1e-2 relative deviation vs the f32 reference.
    assert jnp.allclose(out, ref, atol=3e-2, rtol=3e-2), "mismatch vs reference"

    # TODO(synk): transform_scatter=True / reduction='sum'|'max' variants not wired in; only
    # the module defaults (transform_scatter=False, reduction='mean', num_layers=1) are kernelized.
    print("KERNEL_OK")
</pallas_src>

<mosaic_0001>
module attributes {stable_mosaic.version = 11 : i64} {
  func.func @_inter_message_kernel(%arg0: i32, %arg1: i32, %arg2: memref<1x128xi32, #tpu.memory_space<vmem>>, %arg3: memref<128x128xbf16, #tpu.memory_space<vmem>>, %arg4: memref<128x128xbf16, #tpu.memory_space<vmem>>, %arg5: memref<1x128xf32, #tpu.memory_space<vmem>>, %arg6: memref<8x128xf32, #tpu.memory_space<vmem>>, %arg7: memref<8x128xf32, #tpu.memory_space<vmem>>) attributes {dimension_semantics = [#tpu.dimension_semantics<parallel>, #tpu.dimension_semantics<arbitrary>], iteration_bounds = array<i64: 1, 1>, scalar_prefetch = 0 : i64, scratch_operands = 1 : i64, tpu.core_type = #tpu.core_type<tc>, window_params = [{transform_indices = @transform_0, window_bounds = array<i64: 1, 128>}, {transform_indices = @transform_1, window_bounds = array<i64: 128, 128>}, {pipeline_mode = #tpu.pipeline_mode<synchronous>, transform_indices = @transform_2, window_bounds = array<i64: 128, 128>}, {pipeline_mode = #tpu.pipeline_mode<synchronous>, transform_indices = @transform_3, window_bounds = array<i64: 1, 128>}, {transform_indices = @transform_4, window_bounds = array<i64: 8, 128>}]} {
    %c0_i32 = arith.constant 0 : i32
    %0 = arith.cmpi eq, %arg1, %c0_i32 : i32
    %1 = arith.extui %0 : i1 to i32
    %c0_i32_0 = arith.constant 0 : i32
    %2 = arith.cmpi ne, %1, %c0_i32_0 : i32
    scf.if %2 {
      %cst_10 = arith.constant 0.000000e+00 : f32
      %21 = vector.broadcast %cst_10 : f32 to vector<8x128xf32>
      %c0_11 = arith.constant 0 : index
      %c0_12 = arith.constant 0 : index
      %22 = vector.load %arg7[%c0_11, %c0_12] : memref<8x128xf32, #tpu.memory_space<vmem>>, vector<8x128xf32>
      tpu.vector_store %arg7[%c0_11, %c0_12], %21 {strides = array<i32>} : memref<8x128xf32, #tpu.memory_space<vmem>>, vector<8x128xf32>,
    } else {
    }
    %c8_i32 = arith.constant 8 : i32
    %3 = arith.muli %arg0, %c8_i32 : i32
    %4 = tpu.iota {dimensions = array<i32: 0>} : vector<8x128xi32>
    %5 = vector.broadcast %3 : i32 to vector<8x128xi32>
    %6 = arith.addi %4, %5 : vector<8x128xi32>
    %c0 = arith.constant 0 : index
    %c0_1 = arith.constant 0 : index
    %7 = vector.load %arg2[%c0, %c0_1] : memref<1x128xi32, #tpu.memory_space<vmem>>, vector<1x128xi32>
    %8 = vector.broadcast %7 : vector<1x128xi32> to vector<8x128xi32>
    %9 = arith.cmpi eq, %6, %8 : vector<8x128xi32>
    %10 = arith.extui %9 : vector<8x128xi1> to vector<8x128xi32>
    %11 = arith.sitofp %10 : vector<8x128xi32> to vector<8x128xf32>
    %12 = arith.truncf %11 : vector<8x128xf32> to vector<8x128xbf16>
    %c0_2 = arith.constant 0 : index
    %c0_3 = arith.constant 0 : index
    %13 = vector.load %arg7[%c0_2, %c0_3] : memref<8x128xf32, #tpu.memory_space<vmem>>, vector<8x128xf32>
    %c0_4 = arith.constant 0 : index
    %c0_5 = arith.constant 0 : index
    %14 = vector.load %arg3[%c0_4, %c0_5] : memref<128x128xbf16, #tpu.memory_space<vmem>>, vector<128x128xbf16>
    %cst = arith.constant dense<0.000000e+00> : vector<8x128xf32>
    %15 = tpu.matmul %12, %14, %cst {dimension_numbers = #tpu.dot_dimension_numbers<[1], [0], [0], [1], [0, 0, 1, 1], [], []>} : vector<8x128xbf16>, vector<128x128xbf16>, vector<8x128xf32> -> vector<8x128xf32>
    %16 = arith.addf %13, %15 : vector<8x128xf32>
    %c0_6 = arith.constant 0 : index
    %c0_7 = arith.constant 0 : index
    %17 = vector.load %arg7[%c0_6, %c0_7] : memref<8x128xf32, #tpu.memory_space<vmem>>, vector<8x128xf32>
    tpu.vector_store %arg7[%c0_6, %c0_7], %16 {strides = array<i32>} : memref<8x128xf32, #tpu.memory_space<vmem>>, vector<8x128xf32>,
    %c0_i32_8 = arith.constant 0 : i32
    %18 = arith.cmpi eq, %arg1, %c0_i32_8 : i32
    %19 = arith.extui %18 : i1 to i32
    %c0_i32_9 = arith.constant 0 : i32
    %20 = arith.cmpi ne, %19, %c0_i32_9 : i32
    scf.if %20 {
      %c0_10 = arith.constant 0 : index
      %c0_11 = arith.constant 0 : index
      %21 = vector.load %arg7[%c0_10, %c0_11] : memref<8x128xf32, #tpu.memory_space<vmem>>, vector<8x128xf32>
      %22 = vector.extract_strided_slice %21 {offsets = [0, 0], sizes = [8, 1], strides = [1, 1]} : vector<8x128xf32> to vector<8x1xf32>
      %cst_12 = arith.constant 1.000000e+00 : f32
      %23 = vector.broadcast %cst_12 : f32 to vector<8x1xf32>
      %24 = arith.maximumf %22, %23 : vector<8x1xf32>
      %25 = tpu.reciprocal %24 {approx = true} : vector<8x1xf32> -> vector<8x1xf32>
      %26 = vector.broadcast %25 : vector<8x1xf32> to vector<8x128xf32>
      %27 = arith.mulf %21, %26 : vector<8x128xf32>
      %28 = arith.truncf %27 : vector<8x128xf32> to vector<8x128xbf16>
      %c0_13 = arith.constant 0 : index
      %c0_14 = arith.constant 0 : index
      %29 = vector.load %arg4[%c0_13, %c0_14] : memref<128x128xbf16, #tpu.memory_space<vmem>>, vector<128x128xbf16>
      %cst_15 = arith.constant dense<0.000000e+00> : vector<8x128xf32>
      %30 = tpu.matmul %28, %29, %cst_15 {dimension_numbers = #tpu.dot_dimension_numbers<[1], [0], [0], [1], [0, 0, 1, 1], [], []>} : vector<8x128xbf16>, vector<128x128xbf16>, vector<8x128xf32> -> vector<8x128xf32>
      %c0_16 = arith.constant 0 : index
      %c0_17 = arith.constant 0 : index
      %31 = vector.load %arg5[%c0_16, %c0_17] : memref<1x128xf32, #tpu.memory_space<vmem>>, vector<1x128xf32>
      %32 = vector.broadcast %31 : vector<1x128xf32> to vector<8x128xf32>
      %33 = arith.addf %30, %32 : vector<8x128xf32>
      %cst_18 = arith.constant 0.000000e+00 : f32
      %34 = vector.broadcast %cst_18 : f32 to vector<8x128xf32>
      %35 = arith.maximumf %33, %34 : vector<8x128xf32>
      %c0_19 = arith.constant 0 : index
      %c0_20 = arith.constant 0 : index
      %36 = vector.load %arg6[%c0_19, %c0_20] : memref<8x128xf32, #tpu.memory_space<vmem>>, vector<8x128xf32>
      tpu.vector_store %arg6[%c0_19, %c0_20], %35 {strides = array<i32>} : memref<8x128xf32, #tpu.memory_space<vmem>>, vector<8x128xf32>,
    } else {
    }
    return
  }
  func.func @transform_0(%arg0: i32, %arg1: i32) -> (i32, i32) {
    %c0_i32 = arith.constant 0 : i32
    %c0_i32_0 = arith.constant 0 : i32
    return %c0_i32, %arg1 : i32, i32
  }
  func.func @transform_1(%arg0: i32, %arg1: i32) -> (i32, i32) {
    %c0_i32 = arith.constant 0 : i32
    %c0_i32_0 = arith.constant 0 : i32
    return %arg1, %c0_i32 : i32, i32
  }
  func.func @transform_2(%arg0: i32, %arg1: i32) -> (i32, i32) {
    %c0_i32 = arith.constant 0 : i32
    %c0_i32_0 = arith.constant 0 : i32
    %c0_i32_1 = arith.constant 0 : i32
    return %c0_i32, %c0_i32_0 : i32, i32
  }
  func.func @transform_3(%arg0: i32, %arg1: i32) -> (i32, i32) {
    %c0_i32 = arith.constant 0 : i32
    %c0_i32_0 = arith.constant 0 : i32
    %c0_i32_1 = arith.constant 0 : i32
    return %c0_i32, %c0_i32_0 : i32, i32
  }
  func.func @transform_4(%arg0: i32, %arg1: i32) -> (i32, i32) {
    %c0_i32 = arith.constant 0 : i32
    %c0_i32_0 = arith.constant 0 : i32
    return %arg0, %c0_i32 : i32, i32
  }
}

</mosaic_0001>

<llo_original>
// kernel: tpu_custom_call.1
$region0: #{tpu_custom_call.1}
  #allocation0 [shape = 'u32[]', space=smem, size = 0x4, offset = 0x4, fixed_abs, tag = 'smem constant byte address 0x4 - core index']
  #allocation1 [shape = 'u32[144,128]{1,0:T(1,128)}', space=vmem, size = 0x12000, scoped, tag = 'internal scratch']
  #allocation2 [shape = 'f32[8,128]{1,0:T(8,128)}', space=vmem, size = 0x1000, scoped, tag = 'scratch operand']
  %s0 = inlined_call_operand.hbm [shape: s32[1,128], index: 0, kind: input, shape index: {}]
  %s1 = inlined_call_operand.hbm [shape: bf16[128,128], index: 1, kind: input, shape index: {}]
  %s2 = inlined_call_operand.hbm [shape: bf16[128,128], index: 2, kind: input, shape index: {}]
  %s3 = inlined_call_operand.vmem [shape: f32[1,128], index: 3, kind: input, shape index: {}]
  %s4 = inlined_call_operand.hbm [shape: f32[8,128], index: 4, kind: output, shape index: {}]
  %s5 = sld [smem:[#allocation0]]
  $region46: #{tpu_custom_call.1} parent=0
    _
  %s7 = ssub.s32 1, %s5
  %s8 = scalar_select 0, %s7, %s5
  $region1: #{tpu_custom_call.1} parent=0
    #allocation3 [shape = 'u8[512]{0}', space=vmem, size = 0x400, scoped, tag = 'input window, operand 0, single buffered']
    #allocation4 [shape = 's32[1]{0}', space=sflag, size = 0x4, scoped, tag = 'scoped memory for tpu_custom_call.1']
    #allocation5 [shape = 's32[1]{0}', space=sflag, size = 0x4, scoped, tag = 'scoped memory for tpu_custom_call.1']
    #allocation6 [shape = 'u8[32768]{0}', space=vmem, size = 0x8000, scoped, tag = 'input window, operand 1, single buffered']
    #allocation7 [shape = 's32[1]{0}', space=sflag, size = 0x4, scoped, tag = 'scoped memory for tpu_custom_call.1']
    #allocation8 [shape = 'u8[32768]{0}', space=vmem, size = 0x8000, scoped, tag = 'input window, operand 2, single buffered']
    #allocation9 [shape = 'u8[4096]{0}', space=vmem, size = 0x1000, scoped, tag = 'output window, operand 0, single buffered']
    %9 = vsyncpa [#allocation4], 0
    %10 = vsyncpa [#allocation7], 0
    %11 = vsyncpa [#allocation5], 0
    // Predicated region
    $region2: #{tpu_custom_call.1} parent=1 // pred_check
      _
    $region3: #{tpu_custom_call.1} parent=1 // pred_check_branch
      %13 = sbr.rel (0) target = $region5
    $region4: #{tpu_custom_call.1} parent=1 // pred_region
      %s15 = ssub.s32 16, 16
      %16 = vsyncadd [#allocation4], %s15
      %s18 = sshll.u32 [#allocation3], 4
      %s19 = int_to_ptr.vmem [resolvable:$true] %s18
      %21 = dma.hbm_to_vmem [thread:$0]  %s0, 16, %s19, [#allocation4]
    $region5: #{tpu_custom_call.1} parent=1 // pred_fallthru
      _
    // Predicated region
    $region6: #{tpu_custom_call.1} parent=1 // pred_check
      _
    $region7: #{tpu_custom_call.1} parent=1 // pred_check_branch
      %23 = sbr.rel (0) target = $region9
    $region8: #{tpu_custom_call.1} parent=1 // pred_region
      %s25 = ssub.s32 1024, 1024
      %26 = vsyncadd [#allocation7], %s25
      %s27 = sshll.u32 [#allocation6], 4
      %s28 = int_to_ptr.vmem [resolvable:$true] %s27
      %33 = dma.hbm_to_vmem [thread:$0]  %s1, 1024, %s28, [#allocation7], 64, 64, 4
    $region9: #{tpu_custom_call.1} parent=1 // pred_fallthru
      _
    // Predicated region
    $region10: #{tpu_custom_call.1} parent=1 // pred_check
      _
    $region11: #{tpu_custom_call.1} parent=1 // pred_check_branch
      %35 = sbr.rel (0) target = $region13
    $region12: #{tpu_custom_call.1} parent=1 // pred_region
      %s37 = ssub.s32 1024, 1024
      %38 = vsyncadd [#allocation7], %s37
      %s39 = sshll.u32 [#allocation8], 4
      %s40 = int_to_ptr.vmem [resolvable:$true] %s39
      %45 = dma.hbm_to_vmem [thread:$0]  %s2, 1024, %s40, [#allocation7], 64, 64, 4
    $region13: #{tpu_custom_call.1} parent=1 // pred_fallthru
      _
    // Predicated region
    $region14: #{tpu_custom_call.1} parent=1 // pred_check
      _
    $region15: #{tpu_custom_call.1} parent=1 // pred_check_branch
      %47 = sbr.rel (0) target = $region17
    $region16: #{tpu_custom_call.1} parent=1 // pred_region
      _
    $region17: #{tpu_custom_call.1} parent=1 // pred_fallthru
      _
    // Predicated region
    $region18: #{tpu_custom_call.1} parent=1 // pred_check
      _
    $region19: #{tpu_custom_call.1} parent=1 // pred_check_branch
      %49 = sbr.rel (0) target = $region21
    $region20: #{tpu_custom_call.1} parent=1 // pred_region
      %50 = dma.done [#allocation4], 16
    $region21: #{tpu_custom_call.1} parent=1 // pred_fallthru
      _
    // Predicated region
    $region22: #{tpu_custom_call.1} parent=1 // pred_check
      _
    $region23: #{tpu_custom_call.1} parent=1 // pred_check_branch
      %52 = sbr.rel (0) target = $region25
    $region24: #{tpu_custom_call.1} parent=1 // pred_region
      %53 = dma.done [#allocation7], 1024
    $region25: #{tpu_custom_call.1} parent=1 // pred_fallthru
      _
    // Predicated region
    $region26: #{tpu_custom_call.1} parent=1 // pred_check
      _
    $region27: #{tpu_custom_call.1} parent=1 // pred_check_branch
      %55 = sbr.rel (0) target = $region29
    $region28: #{tpu_custom_call.1} parent=1 // pred_region
      %56 = dma.done [#allocation7], 1024
    $region29: #{tpu_custom_call.1} parent=1 // pred_fallthru
      _
    %p58 = scmp.eq.s32.totalorder 0, 0
    // Predicated region
    $region30: #{tpu_custom_call.1} parent=1 // pred_check
      %p59 = pneg %p58
    $region31: #{tpu_custom_call.1} parent=1 // pred_check_branch
      %61 = sbr.rel (%p59) target = $region33
    $region32: #{tpu_custom_call.1} parent=1 // pred_region
      %62 = vst [vmem:[#allocation2] sm:$0xff] 0.0
    $region33: #{tpu_custom_call.1} parent=1 // pred_fallthru
      _
    %s63 = smul.u32 0, 8
    %v64 = vlaneseq
    %v65 = vshrl.u32 %v64, 7
    %v66 = vstv %s63
    %v67 = vadd.s32 %v65, %v66
    %v68 = vld [vmem:[#allocation3] sm:$0x1]
    %v69 = vlaneseq
    %v70 = vshrl.u32 %v69, 7
    %v71 = vsub.s32 0, %v70
    %v72 = vrot.slane %v68, %v71
    %vm73 = vcmp.eq.s32.totalorder %v67, %v72
    %v74 = vsel %vm73, 1, 0
    %v75 = vcvt.s32.f32 %v74
    %v76 = vpack.c.bf16 %v75, %v75
    %v77 = vld [vmem:[#allocation2] sm:$0xff]
    %v78 = vld [vmem:[#allocation6] sm:$0xf]
    %v79 = vld [vmem:[#allocation6 + $0x4] sm:$0xf]
    %v80 = vld [vmem:[#allocation6 + $0x8] sm:$0xf]
    %v81 = vld [vmem:[#allocation6 + $0xc] sm:$0xf]
    %v82 = vld [vmem:[#allocation6 + $0x10] sm:$0xf]
    %v83 = vld [vmem:[#allocation6 + $0x14] sm:$0xf]
    %v84 = vld [vmem:[#allocation6 + $0x18] sm:$0xf]
    %v85 = vld [vmem:[#allocation6 + $0x1c] sm:$0xf]
    %v86 = vld [vmem:[#allocation6 + $0x20] sm:$0xf]
    %v87 = vld [vmem:[#allocation6 + $0x24] sm:$0xf]
    %v88 = vld [vmem:[#allocation6 + $0x28] sm:$0xf]
    %v89 = vld [vmem:[#allocation6 + $0x2c] sm:$0xf]
    %v90 = vld [vmem:[#allocation6 + $0x30] sm:$0xf]
    %v91 = vld [vmem:[#allocation6 + $0x34] sm:$0xf]
    %v92 = vld [vmem:[#allocation6 + $0x38] sm:$0xf]
    %v93 = vld [vmem:[#allocation6 + $0x3c] sm:$0xf]
    %v110 = vunpack.c.l.b16 %v78
    %v111 = vunpack.c.l.b16 %v79
    %v112 = vunpack.c.l.b16 %v80
    %v113 = vunpack.c.l.b16 %v81
    %v114 = vunpack.c.l.b16 %v82
    %v115 = vunpack.c.l.b16 %v83
    %v116 = vunpack.c.l.b16 %v84
    %v117 = vunpack.c.l.b16 %v85
    %v118 = vunpack.c.l.b16 %v86
    %v119 = vunpack.c.l.b16 %v87
    %v120 = vunpack.c.l.b16 %v88
    %v121 = vunpack.c.l.b16 %v89
    %v122 = vunpack.c.l.b16 %v90
    %v123 = vunpack.c.l.b16 %v91
    %v124 = vunpack.c.l.b16 %v92
    %v125 = vunpack.c.l.b16 %v93
    %v126 = vpack.c.b16 %v111, %v110
    %v127 = vpack.c.b16 %v113, %v112
    %v128 = vpack.c.b16 %v115, %v114
    %v129 = vpack.c.b16 %v117, %v116
    %v130 = vpack.c.b16 %v119, %v118
    %v131 = vpack.c.b16 %v121, %v120
    %v132 = vpack.c.b16 %v123, %v122
    %v133 = vpack.c.b16 %v125, %v124
    %142 = vmatprep.subr.bf16.mxu0 0
    %143 = vmatpush1.bf16.msra.mxu0 %v133
    %144 = vmatprep.subr.bf16.mxu0 0
    %145 = vmatpush1.bf16.msra.mxu0 %v132
    %146 = vmatprep.subr.bf16.mxu0 0
    %147 = vmatpush1.bf16.msra.mxu0 %v131
    %148 = vmatprep.subr.bf16.mxu0 0
    %149 = vmatpush1.bf16.msra.mxu0 %v130
    %150 = vmatprep.subr.bf16.mxu0 0
    %151 = vmatpush1.bf16.msra.mxu0 %v129
    %152 = vmatprep.subr.bf16.mxu0 0
    %153 = vmatpush1.bf16.msra.mxu0 %v128
    %154 = vmatprep.subr.bf16.mxu0 0
    %155 = vmatpush1.bf16.msra.mxu0 %v127
    %156 = vmatprep.subr.bf16.mxu0 0
    %157 = vmatpush1.bf16.msra.mxu0 %v126
    %158 = vmatprep.subr.bf16.mxu0 0
    %159 = vmatpush2.bf16.msra.mxu0 0
    %160 = vmatprep.subr.bf16.mxu0 0
    %161 = vmatpush2.bf16.msra.mxu0 0
    %162 = vmatprep.subr.bf16.mxu0 0
    %163 = vmatpush2.bf16.msra.mxu0 0
    %164 = vmatprep.subr.bf16.mxu0 0
    %165 = vmatpush2.bf16.msra.mxu0 0
    %166 = vmatprep.subr.bf16.mxu0 0
    %167 = vmatpush2.bf16.msra.mxu0 0
    %168 = vmatprep.subr.bf16.mxu0 0
    %169 = vmatpush2.bf16.msra.mxu0 0
    %170 = vmatprep.subr.bf16.mxu0 0
    %171 = vmatpush2.bf16.msra.mxu0 0
    %172 = vmatprep.subr.bf16.mxu0 0
    %173 = vmatpush2.bf16.msra.mxu0 0
    %174 = vmatprep.mubr.bf16.mxu0 0
    %175 = vmatmul.mubr.bf16.gmra.mxu0 %v76
    %v176 = vpop.f32.mrf.mxu0
    %v177 = vadd.f32 0.0, %v176
    %v178 = vpop.f32.mrf.mxu0
    %v179 = vpop.f32.mrf.mxu0
    %v180 = vpop.f32.mrf.mxu0
    %181 = vdwg.mxu0
    %v182 = vadd.f32 %v77, %v177
    %183 = vst [vmem:[#allocation2] sm:$0xff] %v182
    // Predicated region
    $region34: #{tpu_custom_call.1} parent=1 // pred_check
      %p184 = pneg %p58
    $region35: #{tpu_custom_call.1} parent=1 // pred_check_branch
      %186 = sbr.rel (%p184) target = $region37
    $region36: #{tpu_custom_call.1} parent=1 // pred_region
      %v187 = vld [vmem:[#allocation2] sm:$0xff]
      %v188 = vmax.f32 %v187, 1.0
      %v189 = vrcp.pop %v188
      %191 = vset.pattern.permute.xlu0 0
      %192 = vperm.xlu0 %191, %v189
      %v193 = vpop.permute.xlu0 %192
      %v195 = vmul.f32 %v187, %v193
      %v196 = vpack.c.bf16 %v195, %v195
      %v197 = vld [vmem:[#allocation8] sm:$0xf]
      %v198 = vld [vmem:[#allocation8 + $0x4] sm:$0xf]
      %v199 = vld [vmem:[#allocation8 + $0x8] sm:$0xf]
      %v200 = vld [vmem:[#allocation8 + $0xc] sm:$0xf]
      %v201 = vld [vmem:[#allocation8 + $0x10] sm:$0xf]
      %v202 = vld [vmem:[#allocation8 + $0x14] sm:$0xf]
      %v203 = vld [vmem:[#allocation8 + $0x18] sm:$0xf]
      %v204 = vld [vmem:[#allocation8 + $0x1c] sm:$0xf]
      %v205 = vld [vmem:[#allocation8 + $0x20] sm:$0xf]
      %v206 = vld [vmem:[#allocation8 + $0x24] sm:$0xf]
      %v207 = vld [vmem:[#allocation8 + $0x28] sm:$0xf]
      %v208 = vld [vmem:[#allocation8 + $0x2c] sm:$0xf]
      %v209 = vld [vmem:[#allocation8 + $0x30] sm:$0xf]
      %v210 = vld [vmem:[#allocation8 + $0x34] sm:$0xf]
      %v211 = vld [vmem:[#allocation8 + $0x38] sm:$0xf]
      %v212 = vld [vmem:[#allocation8 + $0x3c] sm:$0xf]
      %v213 = vld [vmem:[%s3] sm:$0x1]
      %v215 = vlaneseq
      %v216 = vshrl.u32 %v215, 7
      %v217 = vsub.s32 0, %v216
      %v218 = vrot.slane %v213, %v217
      %v236 = vunpack.c.l.b16 %v197
      %v237 = vunpack.c.l.b16 %v198
      %v238 = vunpack.c.l.b16 %v199
      %v239 = vunpack.c.l.b16 %v200
      %v240 = vunpack.c.l.b16 %v201
      %v241 = vunpack.c.l.b16 %v202
      %v242 = vunpack.c.l.b16 %v203
      %v243 = vunpack.c.l.b16 %v204
      %v244 = vunpack.c.l.b16 %v205
      %v245 = vunpack.c.l.b16 %v206
      %v246 = vunpack.c.l.b16 %v207
      %v247 = vunpack.c.l.b16 %v208
      %v248 = vunpack.c.l.b16 %v209
      %v249 = vunpack.c.l.b16 %v210
      %v250 = vunpack.c.l.b16 %v211
      %v251 = vunpack.c.l.b16 %v212
      %v252 = vpack.c.b16 %v237, %v236
      %v253 = vpack.c.b16 %v239, %v238
      %v254 = vpack.c.b16 %v241, %v240
      %v255 = vpack.c.b16 %v243, %v242
      %v256 = vpack.c.b16 %v245, %v244
      %v257 = vpack.c.b16 %v247, %v246
      %v258 = vpack.c.b16 %v249, %v248
      %v259 = vpack.c.b16 %v251, %v250
      %268 = vmatprep.subr.bf16.mxu0 0
      %269 = vmatpush1.bf16.msra.mxu0 %v259
      %270 = vmatprep.subr.bf16.mxu0 0
      %271 = vmatpush1.bf16.msra.mxu0 %v258
      %272 = vmatprep.subr.bf16.mxu0 0
      %273 = vmatpush1.bf16.msra.mxu0 %v257
      %274 = vmatprep.subr.bf16.mxu0 0
      %275 = vmatpush1.bf16.msra.mxu0 %v256
      %276 = vmatprep.subr.bf16.mxu0 0
      %277 = vmatpush1.bf16.msra.mxu0 %v255
      %278 = vmatprep.subr.bf16.mxu0 0
      %279 = vmatpush1.bf16.msra.mxu0 %v254
      %280 = vmatprep.subr.bf16.mxu0 0
      %281 = vmatpush1.bf16.msra.mxu0 %v253
      %282 = vmatprep.subr.bf16.mxu0 0
      %283 = vmatpush1.bf16.msra.mxu0 %v252
      %284 = vmatprep.subr.bf16.mxu0 0
      %285 = vmatpush2.bf16.msra.mxu0 0
      %286 = vmatprep.subr.bf16.mxu0 0
      %287 = vmatpush2.bf16.msra.mxu0 0
      %288 = vmatprep.subr.bf16.mxu0 0
      %289 = vmatpush2.bf16.msra.mxu0 0
      %290 = vmatprep.subr.bf16.mxu0 0
      %291 = vmatpush2.bf16.msra.mxu0 0
      %292 = vmatprep.subr.bf16.mxu0 0
      %293 = vmatpush2.bf16.msra.mxu0 0
      %294 = vmatprep.subr.bf16.mxu0 0
      %295 = vmatpush2.bf16.msra.mxu0 0
      %296 = vmatprep.subr.bf16.mxu0 0
      %297 = vmatpush2.bf16.msra.mxu0 0
      %298 = vmatprep.subr.bf16.mxu0 0
      %299 = vmatpush2.bf16.msra.mxu0 0
      %300 = vmatprep.mubr.bf16.mxu0 0
      %301 = vmatmul.mubr.bf16.gmra.mxu0 %v196
      %v302 = vpop.f32.mrf.mxu0
      %v303 = vadd.f32 %v218, %v302
      %v304 = vpop.f32.mrf.mxu0
      %v305 = vpop.f32.mrf.mxu0
      %v306 = vpop.f32.mrf.mxu0
      %307 = vdwg.mxu0
      %v308 = vmax.f32 %v303, 0.0
      %309 = vst [vmem:[#allocation9] sm:$0xff] %v308
    $region37: #{tpu_custom_call.1} parent=1 // pred_fallthru
      _
    // Predicated region
    $region38: #{tpu_custom_call.1} parent=1 // pred_check
      _
    $region39: #{tpu_custom_call.1} parent=1 // pred_check_branch
      %311 = sbr.rel (0) target = $region41
    $region40: #{tpu_custom_call.1} parent=1 // pred_region
      %s313 = ssub.s32 128, 128
      %314 = vsyncadd [#allocation5], %s313
      %s316 = sshll.u32 [#allocation9], 4
      %s317 = int_to_ptr.vmem [resolvable:$true] %s316
      %319 = dma.vmem_to_hbm [thread:$0]  %s317, 128, %s4, [#allocation5]
    $region41: #{tpu_custom_call.1} parent=1 // pred_fallthru
      _
    // Predicated region
    $region42: #{tpu_custom_call.1} parent=1 // pred_check
      _
    $region43: #{tpu_custom_call.1} parent=1 // pred_check_branch
      %321 = sbr.rel (0) target = $region45
    $region44: #{tpu_custom_call.1} parent=1 // pred_region
      %322 = dma.done [#allocation5], 128
    $region45: #{tpu_custom_call.1} parent=1 // pred_fallthru
      _
    %323 = vsyncpa [#allocation4], 1
    %324 = vsyncpa [#allocation7], 1
    %325 = vsyncpa [#allocation5], 1

</llo_original>
